<compile_context>
chip_gen: v7x
topology: tpu7x:2x2x1
jax: 0.10.0
libtpu: 0.0.40
codegen_flags: <defaults>
</compile_context>

<pallas_src>
import functools

import jax
import jax.numpy as jnp
from jax.experimental import pallas as pl
from jax.experimental.pallas import tpu as pltpu

KH = KW = 3  # 3x3 conv, padding=1 (SAME), stride=1


def _num_tensorcores_per_chip():
    """2 TensorCores on v7x, 1 on v5e/v6e (safe default 1)."""
    try:
        kind = jax.devices()[0].device_kind.lower()
    except Exception:
        return 1
    return 2 if ("v7" in kind or "7x" in kind) else 1


def _conv_rows_kernel(x_ref, wb_ref, b_ref, o_ref):
    # x_ref : (NBLK, H, W*Cin)      lane-packed activations (bf16 or f32)
    # wb_ref: (KH*W*Cin, W*Cout)    fused banded weights (kh, kw taps + W padding)
    # b_ref : (1, W*Cout)           bias tiled over W (f32)
    # o_ref : (NBLK, H, W*Cout)     lane-dense f32 output (W*Cout = 128 here)
    nblk, h, wcin = x_ref.shape
    wcout = o_ref.shape[-1]
    mxu_dtype = wb_ref.dtype

    # Upcast once: rolls/masks run on f32 so the sublane rotate never has to
    # deal with packed bf16 rows (safe on v5e/v6e/v7x); MXU operands are
    # downcast right before the single fused dot.
    x = x_ref[...].astype(jnp.float32)
    h_ids = jax.lax.broadcasted_iota(jnp.int32, (nblk, h, wcin), 1)

    # Row r of x_up / x_dn holds input row r-1 / r+1 of the SAME image; the one
    # wrapped-around row per boundary is the SAME-padding zero halo -> mask it.
    x_up = jnp.where(h_ids == 0, 0.0, pltpu.roll(x, shift=1, axis=1))
    x_dn = jnp.where(h_ids == h - 1, 0.0, pltpu.roll(x, shift=h - 1, axis=1))

    # Fuse the three kh taps into one K = 3*W*Cin matmul (fills the 256-deep
    # MXU far better than three K=W*Cin dots with VALU accumulation).
    xcat = jnp.concatenate(
        [x_up.astype(mxu_dtype), x.astype(mxu_dtype), x_dn.astype(mxu_dtype)],
        axis=-1,
    ).reshape(nblk * h, KH * wcin)

    acc = jnp.dot(xcat, wb_ref[...], preferred_element_type=jnp.float32)
    acc = acc + b_ref[...]                      # bias broadcast over all rows
    o_ref[...] = acc.reshape(nblk, h, wcout)


def prepare_conv_params(w_hwio, bias, W, compute_dtype=jnp.bfloat16):
    """Build the fused banded weight and tiled bias ONCE per parameter update.

    band[kh][w_in*Cin + c, w_out*Cout + co] = w[kh, kw, c, co] iff
    w_in == w_out + kw - 1; out-of-range taps are absent, so the zero padding
    along W is built in.  Bands for kh = 0,1,2 are stacked along K so the
    kernel can do a single (rows, 3*W*Cin) x (3*W*Cin, W*Cout) matmul.
    """
    kh_, kw_, cin, cout = w_hwio.shape
    w = w_hwio.astype(jnp.float32)
    bands = []
    for kh in range(kh_):
        m = jnp.zeros((W * cin, W * cout), jnp.float32)
        for kw in range(kw_):
            diag = jnp.eye(W, W, k=1 - kw, dtype=jnp.float32)
            m = m + jnp.kron(diag, w[kh, kw])
        bands.append(m)
    wb = jnp.concatenate(bands, axis=0).astype(compute_dtype)   # (KH*W*Cin, W*Cout)
    b_tiled = jnp.tile(bias.astype(jnp.float32), W).reshape(1, W * cout)
    return wb, b_tiled


@functools.partial(jax.jit, static_argnames=("num_tc",))
def time_distributed_conv(x_seq, wb, b_tiled, *, num_tc=1):
    """TimeDistributed(Conv2d(Cin->Cout, k=3, padding=1)) forward.

    x_seq   : (B, T, Cin, H, W)   NCHW per time step (PyTorch convention)
    wb      : (KH*W*Cin, W*Cout)  from prepare_conv_params (built once)
    b_tiled : (1, W*Cout)
    returns (B, T, Cout, H, W) float32
    """
    assert x_seq.ndim > 2
    B, T, Cin, H, W = x_seq.shape
    N = B * T
    Cout = b_tiled.shape[-1] // W
    compute_dtype = wb.dtype

    # TimeDistributed fold + float32 cast (spec), then ONE fused relayout to the
    # lane-packed (N, H, W*Cin) kernel layout, stored in the compute dtype.
    # TODO(synk): if neighbouring TimeDistributed layers also consume/produce
    # the lane-packed (N, H, W*C) layout, these boundary transposes disappear.
    x = x_seq.reshape(N, Cin, H, W).astype(jnp.float32)
    x = jnp.transpose(x, (0, 2, 3, 1)).reshape(N, H, W * Cin).astype(compute_dtype)

    # Per-generation grid: one block per TensorCore (v5e/v6e -> grid=1,
    # v7x -> even grid >= 2 so both cores get work, even for odd N), with the
    # block capped at ~256 matmul rows to bound vreg pressure.
    max_rows = 256
    nblk_cap = max(1, max_rows // H)
    nblk = max(1, min(pl.cdiv(N, max(num_tc, 1)), nblk_cap))
    grid = pl.cdiv(N, nblk)
    if num_tc > 1 and grid % num_tc:
        grid += num_tc - grid % num_tc
    n_pad = grid * nblk
    if n_pad != N:
        x = jnp.pad(x, ((0, n_pad - N), (0, 0), (0, 0)))

    itemsize = jnp.dtype(compute_dtype).itemsize
    flops = 2 * n_pad * H * (KH * W * Cin) * (W * Cout)
    bytes_accessed = (n_pad * H * W * Cin * itemsize          # activations in
                      + KH * W * Cin * W * Cout * itemsize    # banded weights
                      + W * Cout * 4                          # bias
                      + n_pad * H * W * Cout * 4)             # f32 out

    out_flat = pl.pallas_call(
        _conv_rows_kernel,
        out_shape=jax.ShapeDtypeStruct((n_pad, H, W * Cout), jnp.float32),
        grid_spec=pltpu.PrefetchScalarGridSpec(
            num_scalar_prefetch=0,
            grid=(grid,),
            in_specs=[
                pl.BlockSpec((nblk, H, W * Cin), lambda n: (n, 0, 0)),
                pl.BlockSpec((KH * W * Cin, W * Cout), lambda n: (0, 0)),
                pl.BlockSpec((1, W * Cout), lambda n: (0, 0)),
            ],
            out_specs=pl.BlockSpec((nblk, H, W * Cout), lambda n: (n, 0, 0)),
        ),
        compiler_params=pltpu.CompilerParams(
            dimension_semantics=("parallel",),
            vmem_limit_bytes=32 * 1024 * 1024,
        ),
        cost_estimate=pl.CostEstimate(
            flops=flops, bytes_accessed=bytes_accessed, transcendentals=0),
    )(x, wb, b_tiled)

    # Lane-packed (N, H, W*Cout) -> NCHW, then TimeDistributed unfold.
    out = out_flat[:N].reshape(N, H, W, Cout)
    out = jnp.transpose(out, (0, 3, 1, 2))
    return out.reshape(B, T, Cout, H, W)


if __name__ == "__main__":
    B, T, Cin, H, W = 2, 8, 4, 16, 16
    Cout = 8

    key = jax.random.PRNGKey(0)
    kx, kw_key, kb = jax.random.split(key, 3)

    x_seq = jax.random.normal(kx, (B, T, Cin, H, W), dtype=jnp.float32)
    # Deterministic synthetic Conv2d parameters (HWIO layout).
    w_hwio = jax.random.normal(kw_key, (KH, KW, Cin, Cout), dtype=jnp.float32) * 0.1
    bias = jax.random.normal(kb, (Cout,), dtype=jnp.float32) * 0.1

    # Parameter-side prep runs ONCE, outside the per-call jitted forward.
    wb, b_tiled = jax.block_until_ready(
        prepare_conv_params(w_hwio, bias, W, compute_dtype=jnp.bfloat16))

    n_tc = _num_tensorcores_per_chip()
    out = jax.block_until_ready(
        time_distributed_conv(x_seq, wb, b_tiled, num_tc=n_tc))
    assert out.shape == (B, T, Cout, H, W), out.shape
    assert out.dtype == jnp.float32

    # Reference: f32 TimeDistributed conv via lax.conv (NHWC / HWIO).
    x_fold = x_seq.reshape(B * T, Cin, H, W).astype(jnp.float32)
    x_nhwc = jnp.transpose(x_fold, (0, 2, 3, 1))
    ref = jax.lax.conv_general_dilated(
        x_nhwc, w_hwio, window_strides=(1, 1), padding="SAME",
        dimension_numbers=("NHWC", "HWIO", "NHWC"),
        precision=jax.lax.Precision.HIGHEST) + bias
    ref = jnp.transpose(ref, (0, 3, 1, 2)).reshape(B, T, Cout, H, W)

    # 2e-2 tolerance covers the bf16 operand storage (accumulation is f32).
    max_err = float(jnp.max(jnp.abs(out - ref)))
    assert jnp.allclose(out, ref, atol=2e-2, rtol=2e-2), max_err

    print("KERNEL_OK")
</pallas_src>

<mosaic_0001>
module attributes {stable_mosaic.version = 11 : i64} {
  func.func @_conv_rows_kernel(%arg0: i32, %arg1: memref<16x16x64xbf16, #tpu.memory_space<vmem>>, %arg2: memref<192x128xbf16, #tpu.memory_space<vmem>>, %arg3: memref<1x128xf32, #tpu.memory_space<vmem>>, %arg4: memref<16x16x128xf32, #tpu.memory_space<vmem>>) attributes {dimension_semantics = [#tpu.dimension_semantics<parallel>], iteration_bounds = array<i64: 1>, scalar_prefetch = 0 : i64, scratch_operands = 0 : i64, tpu.core_type = #tpu.core_type<tc>, window_params = [{transform_indices = @transform_0, window_bounds = array<i64: 16, 16, 64>}, {pipeline_mode = #tpu.pipeline_mode<synchronous>, transform_indices = @transform_1, window_bounds = array<i64: 192, 128>}, {pipeline_mode = #tpu.pipeline_mode<synchronous>, transform_indices = @transform_2, window_bounds = array<i64: 1, 128>}, {transform_indices = @transform_3, window_bounds = array<i64: 16, 16, 128>}]} {
    %c0 = arith.constant 0 : index
    %c0_0 = arith.constant 0 : index
    %c0_1 = arith.constant 0 : index
    %0 = vector.load %arg1[%c0, %c0_0, %c0_1] : memref<16x16x64xbf16, #tpu.memory_space<vmem>>, vector<16x16x64xbf16>
    %1 = arith.extf %0 : vector<16x16x64xbf16> to vector<16x16x64xf32>
    %2 = tpu.iota {dimensions = array<i32: 1>} : vector<16x16x64xi32>
    %c0_i32 = arith.constant 0 : i32
    %3 = vector.broadcast %c0_i32 : i32 to vector<16x16x64xi32>
    %4 = arith.cmpi eq, %2, %3 : vector<16x16x64xi32>
    %c1_i32 = arith.constant 1 : i32
    %5 = tpu.dynamic_rotate %1 by %c1_i32 dim 1 : vector<16x16x64xf32>, i32 -> vector<16x16x64xf32>
    %cst = arith.constant 0.000000e+00 : f32
    %6 = vector.broadcast %cst : f32 to vector<16x16x64xf32>
    %7 = arith.select %4, %6, %5 : vector<16x16x64xi1>, vector<16x16x64xf32>
    %c15_i32 = arith.constant 15 : i32
    %8 = vector.broadcast %c15_i32 : i32 to vector<16x16x64xi32>
    %9 = arith.cmpi eq, %2, %8 : vector<16x16x64xi32>
    %c15_i32_2 = arith.constant 15 : i32
    %10 = tpu.dynamic_rotate %1 by %c15_i32_2 dim 1 : vector<16x16x64xf32>, i32 -> vector<16x16x64xf32>
    %cst_3 = arith.constant 0.000000e+00 : f32
    %11 = vector.broadcast %cst_3 : f32 to vector<16x16x64xf32>
    %12 = arith.select %9, %11, %10 : vector<16x16x64xi1>, vector<16x16x64xf32>
    %13 = arith.truncf %7 : vector<16x16x64xf32> to vector<16x16x64xbf16>
    %14 = arith.truncf %1 : vector<16x16x64xf32> to vector<16x16x64xbf16>
    %15 = arith.truncf %12 : vector<16x16x64xf32> to vector<16x16x64xbf16>
    %16 = tpu.concatenate %13, %14, %15 in 2 : vector<16x16x64xbf16>, vector<16x16x64xbf16>, vector<16x16x64xbf16> -> vector<16x16x192xbf16>
    %17 = vector.shape_cast %16 : vector<16x16x192xbf16> to vector<256x192xbf16>
    %c0_4 = arith.constant 0 : index
    %c0_5 = arith.constant 0 : index
    %18 = vector.load %arg2[%c0_4, %c0_5] : memref<192x128xbf16, #tpu.memory_space<vmem>>, vector<192x128xbf16>
    %cst_6 = arith.constant dense<0.000000e+00> : vector<256x128xf32>
    %19 = tpu.matmul %17, %18, %cst_6 {dimension_numbers = #tpu.dot_dimension_numbers<[1], [0], [0], [1], [0, 0, 1, 1], [], []>} : vector<256x192xbf16>, vector<192x128xbf16>, vector<256x128xf32> -> vector<256x128xf32>
    %c0_7 = arith.constant 0 : index
    %c0_8 = arith.constant 0 : index
    %20 = vector.load %arg3[%c0_7, %c0_8] : memref<1x128xf32, #tpu.memory_space<vmem>>, vector<1x128xf32>
    %21 = vector.broadcast %20 : vector<1x128xf32> to vector<256x128xf32>
    %22 = arith.addf %19, %21 : vector<256x128xf32>
    %23 = vector.shape_cast %22 : vector<256x128xf32> to vector<16x16x128xf32>
    %c0_9 = arith.constant 0 : index
    %c0_10 = arith.constant 0 : index
    %c0_11 = arith.constant 0 : index
    %24 = vector.load %arg4[%c0_9, %c0_10, %c0_11] : memref<16x16x128xf32, #tpu.memory_space<vmem>>, vector<16x16x128xf32>
    tpu.vector_store %arg4[%c0_9, %c0_10, %c0_11], %23 {strides = array<i32>} : memref<16x16x128xf32, #tpu.memory_space<vmem>>, vector<16x16x128xf32>,
    return
  }
  func.func @transform_0(%arg0: i32) -> (i32, i32, i32) {
    %c0_i32 = arith.constant 0 : i32
    %c0_i32_0 = arith.constant 0 : i32
    %c0_i32_1 = arith.constant 0 : i32
    return %arg0, %c0_i32, %c0_i32_0 : i32, i32, i32
  }
  func.func @transform_1(%arg0: i32) -> (i32, i32) {
    %c0_i32 = arith.constant 0 : i32
    %c0_i32_0 = arith.constant 0 : i32
    %c0_i32_1 = arith.constant 0 : i32
    return %c0_i32, %c0_i32_0 : i32, i32
  }
  func.func @transform_2(%arg0: i32) -> (i32, i32) {
    %c0_i32 = arith.constant 0 : i32
    %c0_i32_0 = arith.constant 0 : i32
    %c0_i32_1 = arith.constant 0 : i32
    return %c0_i32, %c0_i32_0 : i32, i32
  }
  func.func @transform_3(%arg0: i32) -> (i32, i32, i32) {
    %c0_i32 = arith.constant 0 : i32
    %c0_i32_0 = arith.constant 0 : i32
    %c0_i32_1 = arith.constant 0 : i32
    return %arg0, %c0_i32, %c0_i32_0 : i32, i32, i32
  }
}

</mosaic_0001>

<llo_original>
// kernel: time_distributed_conv.1
$region0: #{time_distributed_conv.1}
  #allocation0 [shape = 'u32[]', space=smem, size = 0x4, offset = 0x4, fixed_abs, tag = 'smem constant byte address 0x4 - core index']
  #allocation1 [shape = 'u32[144,128]{1,0:T(1,128)}', space=vmem, size = 0x12000, scoped, tag = 'internal scratch']
  %s0 = inlined_call_operand.vmem [shape: bf16[16,16,64], index: 0, kind: input, shape index: {}]
  %s1 = inlined_call_operand.vmem [shape: bf16[192,128], index: 1, kind: input, shape index: {}]
  %s2 = inlined_call_operand.vmem [shape: f32[1,128], index: 2, kind: input, shape index: {}]
  %s3 = inlined_call_operand.vmem [shape: f32[16,16,128], index: 3, kind: output, shape index: {}]
  %s4 = sld [smem:[#allocation0]]
  $region22: #{time_distributed_conv.1} parent=0
    _
  %s6 = ssub.s32 1, %s4
  %s7 = scalar_select 0, %s6, %s4
  // Predicated region
  $region2: #{time_distributed_conv.1} parent=0 // pred_check
    _
  $region3: #{time_distributed_conv.1} parent=0 // pred_check_branch
    %9 = sbr.rel (0) target = $region5
  $region4: #{time_distributed_conv.1} parent=0 // pred_region
    _
  $region5: #{time_distributed_conv.1} parent=0 // pred_fallthru
    _
  // Predicated region
  $region6: #{time_distributed_conv.1} parent=0 // pred_check
    _
  $region7: #{time_distributed_conv.1} parent=0 // pred_check_branch
    %11 = sbr.rel (0) target = $region9
  $region8: #{time_distributed_conv.1} parent=0 // pred_region
    _
  $region9: #{time_distributed_conv.1} parent=0 // pred_fallthru
    _
  // Predicated region
  $region10: #{time_distributed_conv.1} parent=0 // pred_check
    _
  $region11: #{time_distributed_conv.1} parent=0 // pred_check_branch
    %13 = sbr.rel (0) target = $region13
  $region12: #{time_distributed_conv.1} parent=0 // pred_region
    _
  $region13: #{time_distributed_conv.1} parent=0 // pred_fallthru
    _
  %v15 = vld [vmem:[%s0] sm:$0xf]
  %v16 = vld [vmem:[%s0 + $0x4] sm:$0xf]
  %v17 = vld [vmem:[%s0 + $0x8] sm:$0xf]
  %v18 = vld [vmem:[%s0 + $0xc] sm:$0xf]
  %v19 = vld [vmem:[%s0 + $0x10] sm:$0xf]
  %v20 = vld [vmem:[%s0 + $0x14] sm:$0xf]
  %v21 = vld [vmem:[%s0 + $0x18] sm:$0xf]
  %v22 = vld [vmem:[%s0 + $0x1c] sm:$0xf]
  %v23 = vld [vmem:[%s0 + $0x20] sm:$0xf]
  %v24 = vld [vmem:[%s0 + $0x24] sm:$0xf]
  %v25 = vld [vmem:[%s0 + $0x28] sm:$0xf]
  %v26 = vld [vmem:[%s0 + $0x2c] sm:$0xf]
  %v27 = vld [vmem:[%s0 + $0x30] sm:$0xf]
  %v28 = vld [vmem:[%s0 + $0x34] sm:$0xf]
  %v29 = vld [vmem:[%s0 + $0x38] sm:$0xf]
  %v30 = vld [vmem:[%s0 + $0x3c] sm:$0xf]
  %v31 = vld [vmem:[%s0 + $0x40] sm:$0xf]
  %v32 = vld [vmem:[%s0 + $0x44] sm:$0xf]
  %v33 = vld [vmem:[%s0 + $0x48] sm:$0xf]
  %v34 = vld [vmem:[%s0 + $0x4c] sm:$0xf]
  %v35 = vld [vmem:[%s0 + $0x50] sm:$0xf]
  %v36 = vld [vmem:[%s0 + $0x54] sm:$0xf]
  %v37 = vld [vmem:[%s0 + $0x58] sm:$0xf]
  %v38 = vld [vmem:[%s0 + $0x5c] sm:$0xf]
  %v39 = vld [vmem:[%s0 + $0x60] sm:$0xf]
  %v40 = vld [vmem:[%s0 + $0x64] sm:$0xf]
  %v41 = vld [vmem:[%s0 + $0x68] sm:$0xf]
  %v42 = vld [vmem:[%s0 + $0x6c] sm:$0xf]
  %v43 = vld [vmem:[%s0 + $0x70] sm:$0xf]
  %v44 = vld [vmem:[%s0 + $0x74] sm:$0xf]
  %v45 = vld [vmem:[%s0 + $0x78] sm:$0xf]
  %v46 = vld [vmem:[%s0 + $0x7c] sm:$0xf]
  %v47 = vunpack.c.l.bf16 %v15
  %v48 = vunpack.c.l.bf16 %v16
  %v49 = vunpack.c.l.bf16 %v17
  %v50 = vunpack.c.l.bf16 %v18
  %v51 = vunpack.c.l.bf16 %v19
  %v52 = vunpack.c.l.bf16 %v20
  %v53 = vunpack.c.l.bf16 %v21
  %v54 = vunpack.c.l.bf16 %v22
  %v55 = vunpack.c.l.bf16 %v23
  %v56 = vunpack.c.l.bf16 %v24
  %v57 = vunpack.c.l.bf16 %v25
  %v58 = vunpack.c.l.bf16 %v26
  %v59 = vunpack.c.l.bf16 %v27
  %v60 = vunpack.c.l.bf16 %v28
  %v61 = vunpack.c.l.bf16 %v29
  %v62 = vunpack.c.l.bf16 %v30
  %v63 = vunpack.c.l.bf16 %v31
  %v64 = vunpack.c.l.bf16 %v32
  %v65 = vunpack.c.l.bf16 %v33
  %v66 = vunpack.c.l.bf16 %v34
  %v67 = vunpack.c.l.bf16 %v35
  %v68 = vunpack.c.l.bf16 %v36
  %v69 = vunpack.c.l.bf16 %v37
  %v70 = vunpack.c.l.bf16 %v38
  %v71 = vunpack.c.l.bf16 %v39
  %v72 = vunpack.c.l.bf16 %v40
  %v73 = vunpack.c.l.bf16 %v41
  %v74 = vunpack.c.l.bf16 %v42
  %v75 = vunpack.c.l.bf16 %v43
  %v76 = vunpack.c.l.bf16 %v44
  %v77 = vunpack.c.l.bf16 %v45
  %v78 = vunpack.c.l.bf16 %v46
  %v79 = vlaneseq
  %v80 = vshrl.u32 %v79, 7
  %v81 = vadd.s32 %v80, 8
  %vm82 = vcmp.eq.s32.totalorder %v80, 0
  %vm83 = vcmp.eq.s32.totalorder %v81, 0
  %v84 = vrot.slane %v47, 7
  %v85 = vrot.slane %v49, 7
  %v86 = vrot.slane %v51, 7
  %v87 = vrot.slane %v53, 7
  %v88 = vrot.slane %v55, 7
  %v89 = vrot.slane %v57, 7
  %v90 = vrot.slane %v59, 7
  %v91 = vrot.slane %v61, 7
  %v92 = vrot.slane %v63, 7
  %v93 = vrot.slane %v65, 7
  %v94 = vrot.slane %v67, 7
  %v95 = vrot.slane %v69, 7
  %v96 = vrot.slane %v71, 7
  %v97 = vrot.slane %v73, 7
  %v98 = vrot.slane %v75, 7
  %v99 = vrot.slane %v77, 7
  %v100 = vrot.slane %v48, 7
  %v101 = vrot.slane %v50, 7
  %v102 = vrot.slane %v52, 7
  %v103 = vrot.slane %v54, 7
  %v104 = vrot.slane %v56, 7
  %v105 = vrot.slane %v58, 7
  %v106 = vrot.slane %v60, 7
  %v107 = vrot.slane %v62, 7
  %v108 = vrot.slane %v64, 7
  %v109 = vrot.slane %v66, 7
  %v110 = vrot.slane %v68, 7
  %v111 = vrot.slane %v70, 7
  %v112 = vrot.slane %v72, 7
  %v113 = vrot.slane %v74, 7
  %v114 = vrot.slane %v76, 7
  %v115 = vrot.slane %v78, 7
  %vm116 = vcmp.lt.s32.totalorder %v80, 1
  %v117 = vsel %vm116, %v84, %v100
  %v118 = vsel %vm116, %v85, %v101
  %v119 = vsel %vm116, %v86, %v102
  %v120 = vsel %vm116, %v87, %v103
  %v121 = vsel %vm116, %v88, %v104
  %v122 = vsel %vm116, %v89, %v105
  %v123 = vsel %vm116, %v90, %v106
  %v124 = vsel %vm116, %v91, %v107
  %v125 = vsel %vm116, %v92, %v108
  %v126 = vsel %vm116, %v93, %v109
  %v127 = vsel %vm116, %v94, %v110
  %v128 = vsel %vm116, %v95, %v111
  %v129 = vsel %vm116, %v96, %v112
  %v130 = vsel %vm116, %v97, %v113
  %v131 = vsel %vm116, %v98, %v114
  %v132 = vsel %vm116, %v99, %v115
  %v133 = vsel %vm116, %v100, %v84
  %v134 = vsel %vm116, %v101, %v85
  %v135 = vsel %vm116, %v102, %v86
  %v136 = vsel %vm116, %v103, %v87
  %v137 = vsel %vm116, %v104, %v88
  %v138 = vsel %vm116, %v105, %v89
  %v139 = vsel %vm116, %v106, %v90
  %v140 = vsel %vm116, %v107, %v91
  %v141 = vsel %vm116, %v108, %v92
  %v142 = vsel %vm116, %v109, %v93
  %v143 = vsel %vm116, %v110, %v94
  %v144 = vsel %vm116, %v111, %v95
  %v145 = vsel %vm116, %v112, %v96
  %v146 = vsel %vm116, %v113, %v97
  %v147 = vsel %vm116, %v114, %v98
  %v148 = vsel %vm116, %v115, %v99
  %v149 = vsel %vm82, 0.0, %v133
  %v150 = vsel %vm83, 0.0, %v117
  %v151 = vsel %vm82, 0.0, %v134
  %v152 = vsel %vm83, 0.0, %v118
  %v153 = vsel %vm82, 0.0, %v135
  %v154 = vsel %vm83, 0.0, %v119
  %v155 = vsel %vm82, 0.0, %v136
  %v156 = vsel %vm83, 0.0, %v120
  %v157 = vsel %vm82, 0.0, %v137
  %v158 = vsel %vm83, 0.0, %v121
  %v159 = vsel %vm82, 0.0, %v138
  %v160 = vsel %vm83, 0.0, %v122
  %v161 = vsel %vm82, 0.0, %v139
  %v162 = vsel %vm83, 0.0, %v123
  %v163 = vsel %vm82, 0.0, %v140
  %v164 = vsel %vm83, 0.0, %v124
  %v165 = vsel %vm82, 0.0, %v141
  %v166 = vsel %vm83, 0.0, %v125
  %v167 = vsel %vm82, 0.0, %v142
  %v168 = vsel %vm83, 0.0, %v126
  %v169 = vsel %vm82, 0.0, %v143
  %v170 = vsel %vm83, 0.0, %v127
  %v171 = vsel %vm82, 0.0, %v144
  %v172 = vsel %vm83, 0.0, %v128
  %v173 = vsel %vm82, 0.0, %v145
  %v174 = vsel %vm83, 0.0, %v129
  %v175 = vsel %vm82, 0.0, %v146
  %v176 = vsel %vm83, 0.0, %v130
  %v177 = vsel %vm82, 0.0, %v147
  %v178 = vsel %vm83, 0.0, %v131
  %v179 = vsel %vm82, 0.0, %v148
  %v180 = vsel %vm83, 0.0, %v132
  %vm181 = vcmp.eq.s32.totalorder %v80, 15
  %vm182 = vcmp.eq.s32.totalorder %v81, 15
  %v183 = vrot.slane %v47, 1
  %v184 = vrot.slane %v49, 1
  %v185 = vrot.slane %v51, 1
  %v186 = vrot.slane %v53, 1
  %v187 = vrot.slane %v55, 1
  %v188 = vrot.slane %v57, 1
  %v189 = vrot.slane %v59, 1
  %v190 = vrot.slane %v61, 1
  %v191 = vrot.slane %v63, 1
  %v192 = vrot.slane %v65, 1
  %v193 = vrot.slane %v67, 1
  %v194 = vrot.slane %v69, 1
  %v195 = vrot.slane %v71, 1
  %v196 = vrot.slane %v73, 1
  %v197 = vrot.slane %v75, 1
  %v198 = vrot.slane %v77, 1
  %v199 = vrot.slane %v48, 1
  %v200 = vrot.slane %v50, 1
  %v201 = vrot.slane %v52, 1
  %v202 = vrot.slane %v54, 1
  %v203 = vrot.slane %v56, 1
  %v204 = vrot.slane %v58, 1
  %v205 = vrot.slane %v60, 1
  %v206 = vrot.slane %v62, 1
  %v207 = vrot.slane %v64, 1
  %v208 = vrot.slane %v66, 1
  %v209 = vrot.slane %v68, 1
  %v210 = vrot.slane %v70, 1
  %v211 = vrot.slane %v72, 1
  %v212 = vrot.slane %v74, 1
  %v213 = vrot.slane %v76, 1
  %v214 = vrot.slane %v78, 1
  %vm215 = vcmp.lt.s32.totalorder %v80, 7
  %v216 = vsel %vm215, %v183, %v199
  %v217 = vsel %vm215, %v184, %v200
  %v218 = vsel %vm215, %v185, %v201
  %v219 = vsel %vm215, %v186, %v202
  %v220 = vsel %vm215, %v187, %v203
  %v221 = vsel %vm215, %v188, %v204
  %v222 = vsel %vm215, %v189, %v205
  %v223 = vsel %vm215, %v190, %v206
  %v224 = vsel %vm215, %v191, %v207
  %v225 = vsel %vm215, %v192, %v208
  %v226 = vsel %vm215, %v193, %v209
  %v227 = vsel %vm215, %v194, %v210
  %v228 = vsel %vm215, %v195, %v211
  %v229 = vsel %vm215, %v196, %v212
  %v230 = vsel %vm215, %v197, %v213
  %v231 = vsel %vm215, %v198, %v214
  %v232 = vsel %vm215, %v199, %v183
  %v233 = vsel %vm215, %v200, %v184
  %v234 = vsel %vm215, %v201, %v185
  %v235 = vsel %vm215, %v202, %v186
  %v236 = vsel %vm215, %v203, %v187
  %v237 = vsel %vm215, %v204, %v188
  %v238 = vsel %vm215, %v205, %v189
  %v239 = vsel %vm215, %v206, %v190
  %v240 = vsel %vm215, %v207, %v191
  %v241 = vsel %vm215, %v208, %v192
  %v242 = vsel %vm215, %v209, %v193
  %v243 = vsel %vm215, %v210, %v194
  %v244 = vsel %vm215, %v211, %v195
  %v245 = vsel %vm215, %v212, %v196
  %v246 = vsel %vm215, %v213, %v197
  %v247 = vsel %vm215, %v214, %v198
  %v248 = vsel %vm181, 0.0, %v216
  %v249 = vsel %vm182, 0.0, %v232
  %v250 = vsel %vm181, 0.0, %v217
  %v251 = vsel %vm182, 0.0, %v233
  %v252 = vsel %vm181, 0.0, %v218
  %v253 = vsel %vm182, 0.0, %v234
  %v254 = vsel %vm181, 0.0, %v219
  %v255 = vsel %vm182, 0.0, %v235
  %v256 = vsel %vm181, 0.0, %v220
  %v257 = vsel %vm182, 0.0, %v236
  %v258 = vsel %vm181, 0.0, %v221
  %v259 = vsel %vm182, 0.0, %v237
  %v260 = vsel %vm181, 0.0, %v222
  %v261 = vsel %vm182, 0.0, %v238
  %v262 = vsel %vm181, 0.0, %v223
  %v263 = vsel %vm182, 0.0, %v239
  %v264 = vsel %vm181, 0.0, %v224
  %v265 = vsel %vm182, 0.0, %v240
  %v266 = vsel %vm181, 0.0, %v225
  %v267 = vsel %vm182, 0.0, %v241
  %v268 = vsel %vm181, 0.0, %v226
  %v269 = vsel %vm182, 0.0, %v242
  %v270 = vsel %vm181, 0.0, %v227
  %v271 = vsel %vm182, 0.0, %v243
  %v272 = vsel %vm181, 0.0, %v228
  %v273 = vsel %vm182, 0.0, %v244
  %v274 = vsel %vm181, 0.0, %v229
  %v275 = vsel %vm182, 0.0, %v245
  %v276 = vsel %vm181, 0.0, %v230
  %v277 = vsel %vm182, 0.0, %v246
  %v278 = vsel %vm181, 0.0, %v231
  %v279 = vsel %vm182, 0.0, %v247
  %v280 = vpack.c.bf16 %v150, %v149
  %v281 = vpack.c.bf16 %v152, %v151
  %v282 = vpack.c.bf16 %v154, %v153
  %v283 = vpack.c.bf16 %v156, %v155
  %v284 = vpack.c.bf16 %v158, %v157
  %v285 = vpack.c.bf16 %v160, %v159
  %v286 = vpack.c.bf16 %v162, %v161
  %v287 = vpack.c.bf16 %v164, %v163
  %v288 = vpack.c.bf16 %v166, %v165
  %v289 = vpack.c.bf16 %v168, %v167
  %v290 = vpack.c.bf16 %v170, %v169
  %v291 = vpack.c.bf16 %v172, %v171
  %v292 = vpack.c.bf16 %v174, %v173
  %v293 = vpack.c.bf16 %v176, %v175
  %v294 = vpack.c.bf16 %v178, %v177
  %v295 = vpack.c.bf16 %v180, %v179
  %v296 = vpack.c.bf16 %v249, %v248
  %v297 = vpack.c.bf16 %v251, %v250
  %v298 = vpack.c.bf16 %v253, %v252
  %v299 = vpack.c.bf16 %v255, %v254
  %v300 = vpack.c.bf16 %v257, %v256
  %v301 = vpack.c.bf16 %v259, %v258
  %v302 = vpack.c.bf16 %v261, %v260
  %v303 = vpack.c.bf16 %v263, %v262
  %v304 = vpack.c.bf16 %v265, %v264
  %v305 = vpack.c.bf16 %v267, %v266
  %v306 = vpack.c.bf16 %v269, %v268
  %v307 = vpack.c.bf16 %v271, %v270
  %v308 = vpack.c.bf16 %v273, %v272
  %v309 = vpack.c.bf16 %v275, %v274
  %v310 = vpack.c.bf16 %v277, %v276
  %v311 = vpack.c.bf16 %v279, %v278
  %v344 = vunpack.c.l.b16 %v15
  %v345 = vunpack.c.l.b16 %v16
  %v346 = vunpack.c.l.b16 %v17
  %v347 = vunpack.c.l.b16 %v18
  %v348 = vunpack.c.l.b16 %v19
  %v349 = vunpack.c.l.b16 %v20
  %v350 = vunpack.c.l.b16 %v21
  %v351 = vunpack.c.l.b16 %v22
  %v352 = vunpack.c.l.b16 %v23
  %v353 = vunpack.c.l.b16 %v24
  %v354 = vunpack.c.l.b16 %v25
  %v355 = vunpack.c.l.b16 %v26
  %v356 = vunpack.c.l.b16 %v27
  %v357 = vunpack.c.l.b16 %v28
  %v358 = vunpack.c.l.b16 %v29
  %v359 = vunpack.c.l.b16 %v30
  %v360 = vunpack.c.l.b16 %v31
  %v361 = vunpack.c.l.b16 %v32
  %v362 = vunpack.c.l.b16 %v33
  %v363 = vunpack.c.l.b16 %v34
  %v364 = vunpack.c.l.b16 %v35
  %v365 = vunpack.c.l.b16 %v36
  %v366 = vunpack.c.l.b16 %v37
  %v367 = vunpack.c.l.b16 %v38
  %v368 = vunpack.c.l.b16 %v39
  %v369 = vunpack.c.l.b16 %v40
  %v370 = vunpack.c.l.b16 %v41
  %v371 = vunpack.c.l.b16 %v42
  %v372 = vunpack.c.l.b16 %v43
  %v373 = vunpack.c.l.b16 %v44
  %v374 = vunpack.c.l.b16 %v45
  %v375 = vunpack.c.l.b16 %v46
  %v376 = vpack.c.b16 %v345, %v344
  %v377 = vpack.c.b16 %v347, %v346
  %v378 = vpack.c.b16 %v349, %v348
  %v379 = vpack.c.b16 %v351, %v350
  %v380 = vpack.c.b16 %v353, %v352
  %v381 = vpack.c.b16 %v355, %v354
  %v382 = vpack.c.b16 %v357, %v356
  %v383 = vpack.c.b16 %v359, %v358
  %v384 = vpack.c.b16 %v361, %v360
  %v385 = vpack.c.b16 %v363, %v362
  %v386 = vpack.c.b16 %v365, %v364
  %v387 = vpack.c.b16 %v367, %v366
  %v388 = vpack.c.b16 %v369, %v368
  %v389 = vpack.c.b16 %v371, %v370
  %v390 = vpack.c.b16 %v373, %v372
  %v391 = vpack.c.b16 %v375, %v374
  %392 = vrot.lane.b32.xlu0 %v376, 64
  %v393 = vpop.permute.xlu0 %392
  %394 = vrot.lane.b32.xlu0 %v377, 64
  %v395 = vpop.permute.xlu0 %394
  %396 = vrot.lane.b32.xlu0 %v378, 64
  %v397 = vpop.permute.xlu0 %396
  %398 = vrot.lane.b32.xlu0 %v379, 64
  %v399 = vpop.permute.xlu0 %398
  %400 = vrot.lane.b32.xlu0 %v380, 64
  %v401 = vpop.permute.xlu0 %400
  %402 = vrot.lane.b32.xlu0 %v381, 64
  %v403 = vpop.permute.xlu0 %402
  %404 = vrot.lane.b32.xlu0 %v382, 64
  %v405 = vpop.permute.xlu0 %404
  %406 = vrot.lane.b32.xlu0 %v383, 64
  %v407 = vpop.permute.xlu0 %406
  %408 = vrot.lane.b32.xlu0 %v384, 64
  %v409 = vpop.permute.xlu0 %408
  %410 = vrot.lane.b32.xlu0 %v385, 64
  %v411 = vpop.permute.xlu0 %410
  %412 = vrot.lane.b32.xlu0 %v386, 64
  %v413 = vpop.permute.xlu0 %412
  %414 = vrot.lane.b32.xlu0 %v387, 64
  %v415 = vpop.permute.xlu0 %414
  %416 = vrot.lane.b32.xlu0 %v388, 64
  %v417 = vpop.permute.xlu0 %416
  %418 = vrot.lane.b32.xlu0 %v389, 64
  %v419 = vpop.permute.xlu0 %418
  %420 = vrot.lane.b32.xlu0 %v390, 64
  %v421 = vpop.permute.xlu0 %420
  %422 = vrot.lane.b32.xlu0 %v391, 64
  %v423 = vpop.permute.xlu0 %422
  %vm424 = vcmask 523264
  %v427 = vsel %vm424, %v280, %v393
  %v431 = vsel %vm424, %v281, %v395
  %v435 = vsel %vm424, %v282, %v397
  %v439 = vsel %vm424, %v283, %v399
  %v443 = vsel %vm424, %v284, %v401
  %v447 = vsel %vm424, %v285, %v403
  %v451 = vsel %vm424, %v286, %v405
  %v455 = vsel %vm424, %v287, %v407
  %v459 = vsel %vm424, %v288, %v409
  %v463 = vsel %vm424, %v289, %v411
  %v467 = vsel %vm424, %v290, %v413
  %v471 = vsel %vm424, %v291, %v415
  %v475 = vsel %vm424, %v292, %v417
  %v479 = vsel %vm424, %v293, %v419
  %v483 = vsel %vm424, %v294, %v421
  %v487 = vsel %vm424, %v295, %v423
  %v489 = vld [vmem:[%s1] sm:$0xf]
  %v490 = vld [vmem:[%s1 + $0x4] sm:$0xf]
  %v491 = vld [vmem:[%s1 + $0x8] sm:$0xf]
  %v492 = vld [vmem:[%s1 + $0xc] sm:$0xf]
  %v493 = vld [vmem:[%s1 + $0x10] sm:$0xf]
  %v494 = vld [vmem:[%s1 + $0x14] sm:$0xf]
  %v495 = vld [vmem:[%s1 + $0x18] sm:$0xf]
  %v496 = vld [vmem:[%s1 + $0x1c] sm:$0xf]
  %v497 = vld [vmem:[%s1 + $0x20] sm:$0xf]
  %v498 = vld [vmem:[%s1 + $0x24] sm:$0xf]
  %v499 = vld [vmem:[%s1 + $0x28] sm:$0xf]
  %v500 = vld [vmem:[%s1 + $0x2c] sm:$0xf]
  %v501 = vld [vmem:[%s1 + $0x30] sm:$0xf]
  %v502 = vld [vmem:[%s1 + $0x34] sm:$0xf]
  %v503 = vld [vmem:[%s1 + $0x38] sm:$0xf]
  %v504 = vld [vmem:[%s1 + $0x3c] sm:$0xf]
  %v505 = vld [vmem:[%s1 + $0x40] sm:$0xf]
  %v506 = vld [vmem:[%s1 + $0x44] sm:$0xf]
  %v507 = vld [vmem:[%s1 + $0x48] sm:$0xf]
  %v508 = vld [vmem:[%s1 + $0x4c] sm:$0xf]
  %v509 = vld [vmem:[%s1 + $0x50] sm:$0xf]
  %v510 = vld [vmem:[%s1 + $0x54] sm:$0xf]
  %v511 = vld [vmem:[%s1 + $0x58] sm:$0xf]
  %v512 = vld [vmem:[%s1 + $0x5c] sm:$0xf]
  %v513 = vld [vmem:[%s2] sm:$0x1]
  %v515 = vlaneseq
  %v516 = vshrl.u32 %v515, 7
  %v517 = vsub.s32 0, %v516
  %v518 = vrot.slane %v513, %v517
  %v544 = vunpack.c.l.b16 %v489
  %v545 = vunpack.c.l.b16 %v490
  %v546 = vunpack.c.l.b16 %v491
  %v547 = vunpack.c.l.b16 %v492
  %v548 = vunpack.c.l.b16 %v493
  %v549 = vunpack.c.l.b16 %v494
  %v550 = vunpack.c.l.b16 %v495
  %v551 = vunpack.c.l.b16 %v496
  %v552 = vunpack.c.l.b16 %v497
  %v553 = vunpack.c.l.b16 %v498
  %v554 = vunpack.c.l.b16 %v499
  %v555 = vunpack.c.l.b16 %v500
  %v556 = vunpack.c.l.b16 %v501
  %v557 = vunpack.c.l.b16 %v502
  %v558 = vunpack.c.l.b16 %v503
  %v559 = vunpack.c.l.b16 %v504
  %v560 = vunpack.c.l.b16 %v505
  %v561 = vunpack.c.l.b16 %v506
  %v562 = vunpack.c.l.b16 %v507
  %v563 = vunpack.c.l.b16 %v508
  %v564 = vunpack.c.l.b16 %v509
  %v565 = vunpack.c.l.b16 %v510
  %v566 = vunpack.c.l.b16 %v511
  %v567 = vunpack.c.l.b16 %v512
  %v568 = vpack.c.b16 %v545, %v544
  %v569 = vpack.c.b16 %v547, %v546
  %v570 = vpack.c.b16 %v549, %v548
  %v571 = vpack.c.b16 %v551, %v550
  %v572 = vpack.c.b16 %v553, %v552
  %v573 = vpack.c.b16 %v555, %v554
  %v574 = vpack.c.b16 %v557, %v556
  %v575 = vpack.c.b16 %v559, %v558
  %v576 = vpack.c.b16 %v561, %v560
  %v577 = vpack.c.b16 %v563, %v562
  %v578 = vpack.c.b16 %v565, %v564
  %v579 = vpack.c.b16 %v567, %v566
  %v593 = vsel %vm424, %v296, 0
  %v596 = vsel %vm424, %v297, 0
  %v599 = vsel %vm424, %v298, 0
  %v602 = vsel %vm424, %v299, 0
  %v605 = vsel %vm424, %v300, 0
  %v608 = vsel %vm424, %v301, 0
  %v611 = vsel %vm424, %v302, 0
  %v614 = vsel %vm424, %v303, 0
  %v617 = vsel %vm424, %v304, 0
  %v620 = vsel %vm424, %v305, 0
  %v623 = vsel %vm424, %v306, 0
  %v626 = vsel %vm424, %v307, 0
  %v629 = vsel %vm424, %v308, 0
  %v632 = vsel %vm424, %v309, 0
  %v635 = vsel %vm424, %v310, 0
  %v638 = vsel %vm424, %v311, 0
  %640 = vmatprep.subr.bf16.mxu0 0
  %641 = vmatpush1.bf16.msra.mxu0 %v568
  %642 = vmatprep.subr.bf16.mxu0 0
  %643 = vmatpush1.bf16.msra.mxu0 %v569
  %644 = vmatprep.subr.bf16.mxu0 0
  %645 = vmatpush1.bf16.msra.mxu0 %v570
  %646 = vmatprep.subr.bf16.mxu0 0
  %647 = vmatpush1.bf16.msra.mxu0 %v571
  %648 = vmatprep.subr.bf16.mxu0 0
  %649 = vmatpush1.bf16.msra.mxu0 %v572
  %650 = vmatprep.subr.bf16.mxu0 0
  %651 = vmatpush1.bf16.msra.mxu0 %v573
  %652 = vmatprep.subr.bf16.mxu0 0
  %653 = vmatpush1.bf16.msra.mxu0 %v574
  %654 = vmatprep.subr.bf16.mxu0 0
  %655 = vmatpush1.bf16.msra.mxu0 %v575
  %656 = vmatprep.subr.bf16.mxu0 0
  %657 = vmatpush1.bf16.msra.mxu0 %v576
  %658 = vmatprep.subr.bf16.mxu0 0
  %659 = vmatpush1.bf16.msra.mxu0 %v577
  %660 = vmatprep.subr.bf16.mxu0 0
  %661 = vmatpush1.bf16.msra.mxu0 %v578
  %662 = vmatprep.subr.bf16.mxu0 0
  %663 = vmatpush1.bf16.msra.mxu0 %v579
  %664 = vmatprep.subr.bf16.mxu0 0
  %665 = vmatpush1.bf16.msra.mxu0 0
  %666 = vmatprep.subr.bf16.mxu0 0
  %667 = vmatpush1.bf16.msra.mxu0 0
  %668 = vmatprep.subr.bf16.mxu0 0
  %669 = vmatpush1.bf16.msra.mxu0 0
  %670 = vmatprep.subr.bf16.mxu0 0
  %671 = vmatpush1.bf16.msra.mxu0 0
  %672 = vmatprep.mubr.bf16.mxu0 %v593
  %673 = vmatmul.mubr.bf16.gmra.mrb[0].mxu0 %v427
  %v674 = vpop.f32.mrb[0].mxu0
  %v675 = vadd.f32 %v518, %v674
  %v676 = vpop.f32.mrb[0].mxu0
  %v677 = vpop.f32.mrb[0].mxu0
  %v678 = vadd.f32 %v518, %v677
  %v679 = vpop.f32.mrb[0].mxu0
  %680 = vmatprep.mubr.bf16.mxu0 %v596
  %681 = vmatmul.mubr.bf16.gmra.mrb[0].mxu0 %v431
  %v682 = vpop.f32.mrb[0].mxu0
  %v683 = vadd.f32 %v518, %v682
  %v684 = vpop.f32.mrb[0].mxu0
  %v685 = vpop.f32.mrb[0].mxu0
  %v686 = vadd.f32 %v518, %v685
  %v687 = vpop.f32.mrb[0].mxu0
  %688 = vmatprep.mubr.bf16.mxu0 %v599
  %689 = vmatmul.mubr.bf16.gmra.mrb[0].mxu0 %v435
  %v690 = vpop.f32.mrb[0].mxu0
  %v691 = vadd.f32 %v518, %v690
  %v692 = vpop.f32.mrb[0].mxu0
  %v693 = vpop.f32.mrb[0].mxu0
  %v694 = vadd.f32 %v518, %v693
  %v695 = vpop.f32.mrb[0].mxu0
  %696 = vmatprep.mubr.bf16.mxu0 %v602
  %697 = vmatmul.mubr.bf16.gmra.mrb[0].mxu0 %v439
  %v698 = vpop.f32.mrb[0].mxu0
  %v699 = vadd.f32 %v518, %v698
  %v700 = vpop.f32.mrb[0].mxu0
  %v701 = vpop.f32.mrb[0].mxu0
  %v702 = vadd.f32 %v518, %v701
  %v703 = vpop.f32.mrb[0].mxu0
  %704 = vmatprep.mubr.bf16.mxu0 %v605
  %705 = vmatmul.mubr.bf16.gmra.mrb[0].mxu0 %v443
  %v706 = vpop.f32.mrb[0].mxu0
  %v707 = vadd.f32 %v518, %v706
  %v708 = vpop.f32.mrb[0].mxu0
  %v709 = vpop.f32.mrb[0].mxu0
  %v710 = vadd.f32 %v518, %v709
  %v711 = vpop.f32.mrb[0].mxu0
  %712 = vmatprep.mubr.bf16.mxu0 %v608
  %713 = vmatmul.mubr.bf16.gmra.mrb[0].mxu0 %v447
  %v714 = vpop.f32.mrb[0].mxu0
  %v715 = vadd.f32 %v518, %v714
  %v716 = vpop.f32.mrb[0].mxu0
  %v717 = vpop.f32.mrb[0].mxu0
  %v718 = vadd.f32 %v518, %v717
  %v719 = vpop.f32.mrb[0].mxu0
  %720 = vmatprep.mubr.bf16.mxu0 %v611
  %721 = vmatmul.mubr.bf16.gmra.mrb[0].mxu0 %v451
  %v722 = vpop.f32.mrb[0].mxu0
  %v723 = vadd.f32 %v518, %v722
  %v724 = vpop.f32.mrb[0].mxu0
  %v725 = vpop.f32.mrb[0].mxu0
  %v726 = vadd.f32 %v518, %v725
  %v727 = vpop.f32.mrb[0].mxu0
  %728 = vmatprep.mubr.bf16.mxu0 %v614
  %729 = vmatmul.mubr.bf16.gmra.mrb[0].mxu0 %v455
  %v730 = vpop.f32.mrb[0].mxu0
  %v731 = vadd.f32 %v518, %v730
  %v732 = vpop.f32.mrb[0].mxu0
  %v733 = vpop.f32.mrb[0].mxu0
  %v734 = vadd.f32 %v518, %v733
  %v735 = vpop.f32.mrb[0].mxu0
  %736 = vmatprep.mubr.bf16.mxu0 %v617
  %737 = vmatmul.mubr.bf16.gmra.mrb[0].mxu0 %v459
  %v738 = vpop.f32.mrb[0].mxu0
  %v739 = vadd.f32 %v518, %v738
  %v740 = vpop.f32.mrb[0].mxu0
  %v741 = vpop.f32.mrb[0].mxu0
  %v742 = vadd.f32 %v518, %v741
  %v743 = vpop.f32.mrb[0].mxu0
  %744 = vmatprep.mubr.bf16.mxu0 %v620
  %745 = vmatmul.mubr.bf16.gmra.mrb[0].mxu0 %v463
  %v746 = vpop.f32.mrb[0].mxu0
  %v747 = vadd.f32 %v518, %v746
  %v748 = vpop.f32.mrb[0].mxu0
  %v749 = vpop.f32.mrb[0].mxu0
  %v750 = vadd.f32 %v518, %v749
  %v751 = vpop.f32.mrb[0].mxu0
  %752 = vmatprep.mubr.bf16.mxu0 %v623
  %753 = vmatmul.mubr.bf16.gmra.mrb[0].mxu0 %v467
  %v754 = vpop.f32.mrb[0].mxu0
  %v755 = vadd.f32 %v518, %v754
  %v756 = vpop.f32.mrb[0].mxu0
  %v757 = vpop.f32.mrb[0].mxu0
  %v758 = vadd.f32 %v518, %v757
  %v759 = vpop.f32.mrb[0].mxu0
  %760 = vmatprep.mubr.bf16.mxu0 %v626
  %761 = vmatmul.mubr.bf16.gmra.mrb[0].mxu0 %v471
  %v762 = vpop.f32.mrb[0].mxu0
  %v763 = vadd.f32 %v518, %v762
  %v764 = vpop.f32.mrb[0].mxu0
  %v765 = vpop.f32.mrb[0].mxu0
  %v766 = vadd.f32 %v518, %v765
  %v767 = vpop.f32.mrb[0].mxu0
  %768 = vmatprep.mubr.bf16.mxu0 %v629
  %769 = vmatmul.mubr.bf16.gmra.mrb[0].mxu0 %v475
  %v770 = vpop.f32.mrb[0].mxu0
  %v771 = vadd.f32 %v518, %v770
  %v772 = vpop.f32.mrb[0].mxu0
  %v773 = vpop.f32.mrb[0].mxu0
  %v774 = vadd.f32 %v518, %v773
  %v775 = vpop.f32.mrb[0].mxu0
  %776 = vmatprep.mubr.bf16.mxu0 %v632
  %777 = vmatmul.mubr.bf16.gmra.mrb[0].mxu0 %v479
  %v778 = vpop.f32.mrb[0].mxu0
  %v779 = vadd.f32 %v518, %v778
  %v780 = vpop.f32.mrb[0].mxu0
  %v781 = vpop.f32.mrb[0].mxu0
  %v782 = vadd.f32 %v518, %v781
  %v783 = vpop.f32.mrb[0].mxu0
  %784 = vmatprep.mubr.bf16.mxu0 %v635
  %785 = vmatmul.mubr.bf16.gmra.mrb[0].mxu0 %v483
  %v786 = vpop.f32.mrb[0].mxu0
  %v787 = vadd.f32 %v518, %v786
  %v788 = vpop.f32.mrb[0].mxu0
  %v789 = vpop.f32.mrb[0].mxu0
  %v790 = vadd.f32 %v518, %v789
  %v791 = vpop.f32.mrb[0].mxu0
  %792 = vmatprep.mubr.bf16.mxu0 %v638
  %793 = vmatmul.mubr.bf16.gmra.mrb[0].mxu0 %v487
  %v794 = vpop.f32.mrb[0].mxu0
  %v795 = vadd.f32 %v518, %v794
  %v796 = vpop.f32.mrb[0].mxu0
  %v797 = vpop.f32.mrb[0].mxu0
  %v798 = vadd.f32 %v518, %v797
  %v799 = vpop.f32.mrb[0].mxu0
  %800 = vdwg.mxu0
  %801 = vst [vmem:[%s3] sm:$0xff] %v675
  %802 = vst [vmem:[%s3 + $0x8] sm:$0xff] %v678
  %803 = vst [vmem:[%s3 + $0x10] sm:$0xff] %v683
  %804 = vst [vmem:[%s3 + $0x18] sm:$0xff] %v686
  %805 = vst [vmem:[%s3 + $0x20] sm:$0xff] %v691
  %806 = vst [vmem:[%s3 + $0x28] sm:$0xff] %v694
  %807 = vst [vmem:[%s3 + $0x30] sm:$0xff] %v699
  %808 = vst [vmem:[%s3 + $0x38] sm:$0xff] %v702
  %809 = vst [vmem:[%s3 + $0x40] sm:$0xff] %v707
  %810 = vst [vmem:[%s3 + $0x48] sm:$0xff] %v710
  %811 = vst [vmem:[%s3 + $0x50] sm:$0xff] %v715
  %812 = vst [vmem:[%s3 + $0x58] sm:$0xff] %v718
  %813 = vst [vmem:[%s3 + $0x60] sm:$0xff] %v723
  %814 = vst [vmem:[%s3 + $0x68] sm:$0xff] %v726
  %815 = vst [vmem:[%s3 + $0x70] sm:$0xff] %v731
  %816 = vst [vmem:[%s3 + $0x78] sm:$0xff] %v734
  %817 = vst [vmem:[%s3 + $0x80] sm:$0xff] %v739
  %818 = vst [vmem:[%s3 + $0x88] sm:$0xff] %v742
  %819 = vst [vmem:[%s3 + $0x90] sm:$0xff] %v747
  %820 = vst [vmem:[%s3 + $0x98] sm:$0xff] %v750
  %821 = vst [vmem:[%s3 + $0xa0] sm:$0xff] %v755
  %822 = vst [vmem:[%s3 + $0xa8] sm:$0xff] %v758
  %823 = vst [vmem:[%s3 + $0xb0] sm:$0xff] %v763
  %824 = vst [vmem:[%s3 + $0xb8] sm:$0xff] %v766
  %825 = vst [vmem:[%s3 + $0xc0] sm:$0xff] %v771
  %826 = vst [vmem:[%s3 + $0xc8] sm:$0xff] %v774
  %827 = vst [vmem:[%s3 + $0xd0] sm:$0xff] %v779
  %828 = vst [vmem:[%s3 + $0xd8] sm:$0xff] %v782
  %829 = vst [vmem:[%s3 + $0xe0] sm:$0xff] %v787
  %830 = vst [vmem:[%s3 + $0xe8] sm:$0xff] %v790
  %831 = vst [vmem:[%s3 + $0xf0] sm:$0xff] %v795
  %832 = vst [vmem:[%s3 + $0xf8] sm:$0xff] %v798
  // Predicated region
  $region14: #{time_distributed_conv.1} parent=0 // pred_check
    _
  $region15: #{time_distributed_conv.1} parent=0 // pred_check_branch
    %834 = sbr.rel (0) target = $region17
  $region16: #{time_distributed_conv.1} parent=0 // pred_region
    _
  $region17: #{time_distributed_conv.1} parent=0 // pred_fallthru
    _
  // Predicated region
  $region18: #{time_distributed_conv.1} parent=0 // pred_check
    _
  $region19: #{time_distributed_conv.1} parent=0 // pred_check_branch
    %836 = sbr.rel (0) target = $region21
  $region20: #{time_distributed_conv.1} parent=0 // pred_region
    _
  $region21: #{time_distributed_conv.1} parent=0 // pred_fallthru
    _

</llo_original>
